<compile_context>
chip_gen: v7x
topology: tpu7x:2x2x1
jax: 0.10.0
libtpu: 0.0.40
codegen_flags: <defaults>
</compile_context>

<pallas_src>
import jax
import jax.numpy as jnp
from jax.experimental import pallas as pl
from jax.experimental.pallas import tpu as pltpu

# ---- small synthetic config (cfg.MODEL.FEATSIZE, cfg.REID.NUM_PERSON) ----
FEATSIZE = 32        # cfg.MODEL.FEATSIZE  (conv output channels C)
NUM_PERSON = 16      # cfg.REID.NUM_PERSON (classifier classes P)
CIN = 4              # input image channels
H, W = 32, 16        # input spatial size (NCHW)
KH, KW = 3, 3
STRIDE = 2
OH, OW = 16, 8       # backbone output map == ReIDTrickHead kernal_size=(16, 8)
S = OH * OW          # 128 spatial positions per image (== one lane group)
K = CIN * KH * KW    # 36  im2col contraction size
BN_EPS = 1e-5


# ---------------------------- fused Pallas kernel --------------------------
def _fused_model2_kernel(pt_ref, w_ref, bshift_ref, wclsT_ref, cbiasT_ref,
                         score_ref, feat_ref):
    # pt_ref    : (K, B_TILE*S) bf16  im2col patches, lane-dense (position minor)
    # w_ref     : (C, K)        bf16  conv weight with backbone BN scale folded
    # bshift_ref: (C, 1)        f32   folded BN shift (includes conv bias)
    # wclsT_ref : (P, C)        bf16  classifier weight with BNNeck scale folded
    # cbiasT_ref: (P, 1)        f32   classifier bias from the BNNeck shift term
    # score_ref : (P, B_TILE)   f32   transposed scores (one column per image)
    # feat_ref  : (C, B_TILE)   f32   transposed pooled features
    c = feat_ref.shape[0]
    bt = feat_ref.shape[1]

    # conv(3x3, s2) + folded BN + ReLU: all images of the tile in ONE MXU matmul
    conv = jnp.dot(w_ref[...], pt_ref[...],
                   preferred_element_type=jnp.float32)            # (C, B_TILE*S)
    conv = jnp.maximum(conv + bshift_ref[...], 0.0)

    # (16, 8) global average pool: per-image lane-chunk reduce (VPU/XLU slots)
    pooled = jnp.sum(conv.reshape(c, bt, S), axis=-1) * (1.0 / S)  # (C, B_TILE)
    feat_ref[...] = pooled            # pre-BNNeck pooled feature (see TODO)

    # BNNeck (eval affine) folded into classifier weight + bias; bf16 MXU op
    scores = jnp.dot(wclsT_ref[...], pooled.astype(jnp.bfloat16),
                     preferred_element_type=jnp.float32)           # (P, B_TILE)
    score_ref[...] = scores + cbiasT_ref[...]


# ------------------------------ wrappers ----------------------------------
def _im2col_t(x):
    """x: (N, Cin, H, W) NCHW -> (K, N*S) lane-dense patches.

    Rows k = ci*KH*KW + kh*KW + kw (matches conv_w.reshape(C, K)),
    columns = n*S + oh*OW + ow (image-major, position-minor)."""
    n = x.shape[0]
    xp = jnp.pad(x, ((0, 0), (0, 0), (1, 1), (1, 1)))
    taps = []
    for kh in range(KH):
        for kw in range(KW):
            taps.append(xp[:, :, kh::STRIDE, kw::STRIDE][:, :, :OH, :OW])
    t = jnp.stack(taps, axis=0)                  # (KH*KW, N, Cin, OH, OW)
    t = jnp.transpose(t, (2, 0, 1, 3, 4))        # (Cin, KH*KW, N, OH, OW)
    return t.reshape(K, n * S)


def _choose_b_tile(n):
    # ~128 images/step amortizes the ~0.35us per-grid-step overhead while the
    # per-step footprint (patch block ~1.2 MB x2 buffers + ~4 MB f32 conv
    # intermediate) stays far below v7x's 64 MiB VMEM; large batches then get
    # >=2 grid steps so both v7x TensorCores are used. Small batches run as one
    # full-batch step (also keeps block dims == full array dims).
    if n >= 256:
        return 128
    return n


def _fused_forward(patches_t, w_t, bshift, wclsT_f, cbiasT, n):
    bt = _choose_b_tile(n)
    n_pad = pl.cdiv(n, bt) * bt
    if n_pad != n:
        patches_t = jnp.pad(patches_t, ((0, 0), (0, (n_pad - n) * S)))
    grid = (n_pad // bt,)

    flops = (2 * n_pad * S * K * FEATSIZE            # conv matmul
             + n_pad * S * FEATSIZE                  # pooling reduce
             + 2 * n_pad * FEATSIZE * NUM_PERSON)    # classifier
    bytes_accessed = (patches_t.size * patches_t.dtype.itemsize
                      + (w_t.size + wclsT_f.size) * 2
                      + (bshift.size + cbiasT.size) * 4
                      + n_pad * (NUM_PERSON + FEATSIZE) * 4)

    scores_t, feat_t = pl.pallas_call(
        _fused_model2_kernel,
        out_shape=(jax.ShapeDtypeStruct((NUM_PERSON, n_pad), jnp.float32),
                   jax.ShapeDtypeStruct((FEATSIZE, n_pad), jnp.float32)),
        grid=grid,
        in_specs=[
            pl.BlockSpec((K, bt * S), lambda i: (0, i)),          # patch stream
            pl.BlockSpec((FEATSIZE, K), lambda i: (0, 0)),        # folded conv w
            pl.BlockSpec((FEATSIZE, 1), lambda i: (0, 0)),        # folded BN shift
            pl.BlockSpec((NUM_PERSON, FEATSIZE), lambda i: (0, 0)),
            pl.BlockSpec((NUM_PERSON, 1), lambda i: (0, 0)),
        ],
        out_specs=(pl.BlockSpec((NUM_PERSON, bt), lambda i: (0, i)),
                   pl.BlockSpec((FEATSIZE, bt), lambda i: (0, i))),
        compiler_params=pltpu.CompilerParams(
            dimension_semantics=("parallel",),
            vmem_limit_bytes=32 * 1024 * 1024),
        cost_estimate=pl.CostEstimate(flops=int(flops), transcendentals=0,
                                      bytes_accessed=int(bytes_accessed)),
    )(patches_t, w_t, bshift, wclsT_f, cbiasT)
    # one cheap host-side transpose back to (N, P) / (N, C)
    return scores_t[:, :n].T, feat_t[:, :n].T


def model2_forward(x, params):
    """x: (N, Cin, H, W) NCHW f32 -> (scores (N, NUM_PERSON), feat (N, FEATSIZE))."""
    # ---- fold backbone BN into the conv weight / shift (host-side, once) ----
    bn_scale = params["bb_gamma"] * jax.lax.rsqrt(params["bb_var"] + BN_EPS)
    w_t = (params["conv_w"].reshape(FEATSIZE, K)
           * bn_scale[:, None]).astype(jnp.bfloat16)                    # (C, K)
    bshift = ((params["conv_b"] - params["bb_mean"]) * bn_scale
              + params["bb_beta"]).reshape(FEATSIZE, 1).astype(jnp.float32)

    # ---- fold head BNNeck (eval affine) into the classifier ----
    hd_scale = params["hd_gamma"] * jax.lax.rsqrt(params["hd_var"] + BN_EPS)
    hd_shift = params["hd_beta"] - params["hd_mean"] * hd_scale
    wclsT_f = (params["cls_w"] * hd_scale[None, :]).astype(jnp.bfloat16)  # (P, C)
    cbiasT = (params["cls_w"] @ hd_shift).reshape(NUM_PERSON, 1).astype(jnp.float32)

    patches_t = _im2col_t(x).astype(jnp.bfloat16)                     # (K, N*S)
    return _fused_forward(patches_t, w_t, bshift, wclsT_f, cbiasT, x.shape[0])


def _reference_forward(x, params):
    """Pure-JAX (f32) reference of the same forward pass."""
    bn_scale = params["bb_gamma"] * jax.lax.rsqrt(params["bb_var"] + BN_EPS)
    conv = jax.lax.conv_general_dilated(
        x, params["conv_w"], window_strides=(STRIDE, STRIDE),
        padding=((1, 1), (1, 1)), dimension_numbers=("NCHW", "OIHW", "NCHW"))
    conv = conv + params["conv_b"][None, :, None, None]
    conv = (bn_scale[None, :, None, None]
            * (conv - params["bb_mean"][None, :, None, None])
            + params["bb_beta"][None, :, None, None])
    conv = jnp.maximum(conv, 0.0)
    feat = conv.mean(axis=(2, 3))                                     # (N, C)
    hd_scale = params["hd_gamma"] * jax.lax.rsqrt(params["hd_var"] + BN_EPS)
    hd_shift = params["hd_beta"] - params["hd_mean"] * hd_scale
    scores = (hd_scale[None, :] * feat + hd_shift[None, :]) @ params["cls_w"].T
    return scores, feat


def init_params(key):
    ks = jax.random.split(key, 8)
    return {
        # backbone conv + BN
        "conv_w": 0.1 * jax.random.normal(ks[0], (FEATSIZE, CIN, KH, KW), jnp.float32),
        "conv_b": 0.01 * jax.random.normal(ks[1], (FEATSIZE,), jnp.float32),
        "bb_gamma": 1.0 + 0.05 * jax.random.normal(ks[2], (FEATSIZE,), jnp.float32),
        "bb_beta": 0.05 * jax.random.normal(ks[3], (FEATSIZE,), jnp.float32),
        "bb_mean": 0.02 * jax.random.normal(ks[4], (FEATSIZE,), jnp.float32),
        "bb_var": jnp.ones((FEATSIZE,), jnp.float32),
        # head BNNeck (bias frozen in PyTorch, still applied in forward)
        "hd_gamma": jnp.ones((FEATSIZE,), jnp.float32),
        "hd_beta": jnp.zeros((FEATSIZE,), jnp.float32),
        "hd_mean": 0.02 * jax.random.normal(ks[5], (FEATSIZE,), jnp.float32),
        "hd_var": jnp.ones((FEATSIZE,), jnp.float32),
        # classifier Linear(FEATSIZE, NUM_PERSON, bias=False)
        "cls_w": 0.1 * jax.random.normal(ks[6], (NUM_PERSON, FEATSIZE), jnp.float32),
    }


if __name__ == "__main__":
    key = jax.random.PRNGKey(0)
    pkey, xkey = jax.random.split(key)
    params = init_params(pkey)
    x = jax.random.normal(xkey, (2, CIN, H, W), jnp.float32)   # NCHW, like PyTorch

    scores, feat = model2_forward(x, params)
    jax.block_until_ready((scores, feat))

    assert scores.shape == (2, NUM_PERSON) and feat.shape == (2, FEATSIZE)
    assert jnp.all(jnp.isfinite(scores)) and jnp.all(jnp.isfinite(feat))

    # loose-tolerance numerical check vs pure-JAX f32 reference (bf16 MXU inputs)
    ref_scores, ref_feat = _reference_forward(x, params)
    assert jnp.allclose(feat, ref_feat, atol=5e-2, rtol=5e-2)
    assert jnp.allclose(scores, ref_scores, atol=5e-2, rtol=5e-2)

    print("KERNEL_OK")
</pallas_src>

<mosaic_0001>
module attributes {stable_mosaic.version = 11 : i64} {
  func.func @_fused_model2_kernel(%arg0: i32, %arg1: memref<36x256xbf16, #tpu.memory_space<vmem>>, %arg2: memref<32x36xbf16, #tpu.memory_space<vmem>>, %arg3: memref<32x1xf32, #tpu.memory_space<vmem>>, %arg4: memref<16x32xbf16, #tpu.memory_space<vmem>>, %arg5: memref<16x1xf32, #tpu.memory_space<vmem>>, %arg6: memref<16x2xf32, #tpu.memory_space<vmem>>, %arg7: memref<32x2xf32, #tpu.memory_space<vmem>>) attributes {dimension_semantics = [#tpu.dimension_semantics<parallel>], iteration_bounds = array<i64: 1>, scalar_prefetch = 0 : i64, scratch_operands = 0 : i64, tpu.core_type = #tpu.core_type<tc>, window_params = [{transform_indices = @transform_0, window_bounds = array<i64: 36, 256>}, {pipeline_mode = #tpu.pipeline_mode<synchronous>, transform_indices = @transform_1, window_bounds = array<i64: 32, 36>}, {pipeline_mode = #tpu.pipeline_mode<synchronous>, transform_indices = @transform_2, window_bounds = array<i64: 32, 1>}, {pipeline_mode = #tpu.pipeline_mode<synchronous>, transform_indices = @transform_3, window_bounds = array<i64: 16, 32>}, {pipeline_mode = #tpu.pipeline_mode<synchronous>, transform_indices = @transform_4, window_bounds = array<i64: 16, 1>}, {transform_indices = @transform_5, window_bounds = array<i64: 16, 2>}, {transform_indices = @transform_6, window_bounds = array<i64: 32, 2>}]} {
    %c0 = arith.constant 0 : index
    %c0_0 = arith.constant 0 : index
    %0 = vector.load %arg2[%c0, %c0_0] : memref<32x36xbf16, #tpu.memory_space<vmem>>, vector<32x36xbf16>
    %c0_1 = arith.constant 0 : index
    %c0_2 = arith.constant 0 : index
    %1 = vector.load %arg1[%c0_1, %c0_2] : memref<36x256xbf16, #tpu.memory_space<vmem>>, vector<36x256xbf16>
    %cst = arith.constant dense<0.000000e+00> : vector<32x256xf32>
    %2 = tpu.matmul %0, %1, %cst {dimension_numbers = #tpu.dot_dimension_numbers<[1], [0], [0], [1], [0, 0, 1, 1], [], []>} : vector<32x36xbf16>, vector<36x256xbf16>, vector<32x256xf32> -> vector<32x256xf32>
    %c0_3 = arith.constant 0 : index
    %c0_4 = arith.constant 0 : index
    %3 = vector.load %arg3[%c0_3, %c0_4] : memref<32x1xf32, #tpu.memory_space<vmem>>, vector<32x1xf32>
    %4 = vector.broadcast %3 : vector<32x1xf32> to vector<32x256xf32>
    %5 = arith.addf %2, %4 : vector<32x256xf32>
    %cst_5 = arith.constant 0.000000e+00 : f32
    %6 = vector.broadcast %cst_5 : f32 to vector<32x256xf32>
    %7 = arith.maximumf %5, %6 : vector<32x256xf32>
    %8 = vector.shape_cast %7 : vector<32x256xf32> to vector<32x2x128xf32>
    %cst_6 = arith.constant dense<0.000000e+00> : vector<32x2xf32>
    %9 = vector.multi_reduction <add>, %8, %cst_6 [2] : vector<32x2x128xf32> to vector<32x2xf32>
    %cst_7 = arith.constant 7.812500e-03 : f32
    %10 = vector.broadcast %cst_7 : f32 to vector<32x2xf32>
    %11 = arith.mulf %9, %10 : vector<32x2xf32>
    %c0_8 = arith.constant 0 : index
    %c0_9 = arith.constant 0 : index
    %12 = vector.load %arg7[%c0_8, %c0_9] : memref<32x2xf32, #tpu.memory_space<vmem>>, vector<32x2xf32>
    tpu.vector_store %arg7[%c0_8, %c0_9], %11 {strides = array<i32>} : memref<32x2xf32, #tpu.memory_space<vmem>>, vector<32x2xf32>,
    %c0_10 = arith.constant 0 : index
    %c0_11 = arith.constant 0 : index
    %13 = vector.load %arg4[%c0_10, %c0_11] : memref<16x32xbf16, #tpu.memory_space<vmem>>, vector<16x32xbf16>
    %14 = arith.truncf %11 : vector<32x2xf32> to vector<32x2xbf16>
    %cst_12 = arith.constant dense<0.000000e+00> : vector<16x2xf32>
    %15 = tpu.matmul %13, %14, %cst_12 {dimension_numbers = #tpu.dot_dimension_numbers<[1], [0], [0], [1], [0, 0, 1, 1], [], []>} : vector<16x32xbf16>, vector<32x2xbf16>, vector<16x2xf32> -> vector<16x2xf32>
    %c0_13 = arith.constant 0 : index
    %c0_14 = arith.constant 0 : index
    %16 = vector.load %arg5[%c0_13, %c0_14] : memref<16x1xf32, #tpu.memory_space<vmem>>, vector<16x1xf32>
    %17 = vector.broadcast %16 : vector<16x1xf32> to vector<16x2xf32>
    %18 = arith.addf %15, %17 : vector<16x2xf32>
    %c0_15 = arith.constant 0 : index
    %c0_16 = arith.constant 0 : index
    %19 = vector.load %arg6[%c0_15, %c0_16] : memref<16x2xf32, #tpu.memory_space<vmem>>, vector<16x2xf32>
    tpu.vector_store %arg6[%c0_15, %c0_16], %18 {strides = array<i32>} : memref<16x2xf32, #tpu.memory_space<vmem>>, vector<16x2xf32>,
    return
  }
  func.func @transform_0(%arg0: i32) -> (i32, i32) {
    %c0_i32 = arith.constant 0 : i32
    %c0_i32_0 = arith.constant 0 : i32
    return %c0_i32, %arg0 : i32, i32
  }
  func.func @transform_1(%arg0: i32) -> (i32, i32) {
    %c0_i32 = arith.constant 0 : i32
    %c0_i32_0 = arith.constant 0 : i32
    %c0_i32_1 = arith.constant 0 : i32
    return %c0_i32, %c0_i32_0 : i32, i32
  }
  func.func @transform_2(%arg0: i32) -> (i32, i32) {
    %c0_i32 = arith.constant 0 : i32
    %c0_i32_0 = arith.constant 0 : i32
    %c0_i32_1 = arith.constant 0 : i32
    return %c0_i32, %c0_i32_0 : i32, i32
  }
  func.func @transform_3(%arg0: i32) -> (i32, i32) {
    %c0_i32 = arith.constant 0 : i32
    %c0_i32_0 = arith.constant 0 : i32
    %c0_i32_1 = arith.constant 0 : i32
    return %c0_i32, %c0_i32_0 : i32, i32
  }
  func.func @transform_4(%arg0: i32) -> (i32, i32) {
    %c0_i32 = arith.constant 0 : i32
    %c0_i32_0 = arith.constant 0 : i32
    %c0_i32_1 = arith.constant 0 : i32
    return %c0_i32, %c0_i32_0 : i32, i32
  }
  func.func @transform_5(%arg0: i32) -> (i32, i32) {
    %c0_i32 = arith.constant 0 : i32
    %c0_i32_0 = arith.constant 0 : i32
    return %c0_i32, %arg0 : i32, i32
  }
  func.func @transform_6(%arg0: i32) -> (i32, i32) {
    %c0_i32 = arith.constant 0 : i32
    %c0_i32_0 = arith.constant 0 : i32
    return %c0_i32, %arg0 : i32, i32
  }
}

</mosaic_0001>

<llo_original>
// kernel: tpu_custom_call.1
$region0: #{tpu_custom_call.1}
  #allocation0 [shape = 'u32[]', space=smem, size = 0x4, offset = 0x4, fixed_abs, tag = 'smem constant byte address 0x4 - core index']
  #allocation1 [shape = 'u32[144,128]{1,0:T(1,128)}', space=vmem, size = 0x12000, scoped, tag = 'internal scratch']
  %s0 = inlined_call_operand.vmem [shape: bf16[36,256], index: 0, kind: input, shape index: {}]
  %s1 = inlined_call_operand.hbm [shape: bf16[32,36], index: 1, kind: input, shape index: {}]
  %s2 = inlined_call_operand.vmem [shape: f32[32,1], index: 2, kind: input, shape index: {}]
  %s3 = inlined_call_operand.vmem [shape: bf16[16,32], index: 3, kind: input, shape index: {}]
  %s4 = inlined_call_operand.vmem [shape: f32[16,1], index: 4, kind: input, shape index: {}]
  %s5 = inlined_call_operand.vmem [shape: f32[16,2], index: 5, kind: output, shape index: {0}]
  %s6 = inlined_call_operand.vmem [shape: f32[32,2], index: 6, kind: output, shape index: {1}]
  %7 = xla_tuple %s5, %s6
  %s8 = sld [smem:[#allocation0]]
  $region42: #{tpu_custom_call.1} parent=0
    _
  %s10 = ssub.s32 1, %s8
  %s11 = scalar_select 0, %s10, %s8
  $region1: #{tpu_custom_call.1} parent=0
    #allocation2 [shape = 'u8[8192]{0}', space=vmem, size = 0x2000, scoped, tag = 'input window, operand 1, single buffered']
    #allocation3 [shape = 's32[1]{0}', space=sflag, size = 0x4, scoped, tag = 'scoped memory for tpu_custom_call.1']
    %12 = vsyncpa [#allocation3], 0
    // Predicated region
    $region2: #{tpu_custom_call.1} parent=1 // pred_check
      _
    $region3: #{tpu_custom_call.1} parent=1 // pred_check_branch
      %14 = sbr.rel (0) target = $region5
    $region4: #{tpu_custom_call.1} parent=1 // pred_region
      _
    $region5: #{tpu_custom_call.1} parent=1 // pred_fallthru
      _
    // Predicated region
    $region6: #{tpu_custom_call.1} parent=1 // pred_check
      _
    $region7: #{tpu_custom_call.1} parent=1 // pred_check_branch
      %16 = sbr.rel (0) target = $region9
    $region8: #{tpu_custom_call.1} parent=1 // pred_region
      %s18 = ssub.s32 256, 256
      %19 = vsyncadd [#allocation3], %s18
      %s20 = sshll.u32 [#allocation2], 4
      %s21 = int_to_ptr.vmem [resolvable:$true] %s20
      %26 = dma.hbm_to_vmem [thread:$0]  %s1, 256, %s21, [#allocation3], 64, 64, 4
    $region9: #{tpu_custom_call.1} parent=1 // pred_fallthru
      _
    // Predicated region
    $region10: #{tpu_custom_call.1} parent=1 // pred_check
      _
    $region11: #{tpu_custom_call.1} parent=1 // pred_check_branch
      %28 = sbr.rel (0) target = $region13
    $region12: #{tpu_custom_call.1} parent=1 // pred_region
      _
    $region13: #{tpu_custom_call.1} parent=1 // pred_fallthru
      _
    // Predicated region
    $region14: #{tpu_custom_call.1} parent=1 // pred_check
      _
    $region15: #{tpu_custom_call.1} parent=1 // pred_check_branch
      %30 = sbr.rel (0) target = $region17
    $region16: #{tpu_custom_call.1} parent=1 // pred_region
      _
    $region17: #{tpu_custom_call.1} parent=1 // pred_fallthru
      _
    // Predicated region
    $region18: #{tpu_custom_call.1} parent=1 // pred_check
      _
    $region19: #{tpu_custom_call.1} parent=1 // pred_check_branch
      %32 = sbr.rel (0) target = $region21
    $region20: #{tpu_custom_call.1} parent=1 // pred_region
      _
    $region21: #{tpu_custom_call.1} parent=1 // pred_fallthru
      _
    // Predicated region
    $region22: #{tpu_custom_call.1} parent=1 // pred_check
      _
    $region23: #{tpu_custom_call.1} parent=1 // pred_check_branch
      %34 = sbr.rel (0) target = $region25
    $region24: #{tpu_custom_call.1} parent=1 // pred_region
      %35 = dma.done [#allocation3], 256
    $region25: #{tpu_custom_call.1} parent=1 // pred_fallthru
      _
    %v37 = vld [vmem:[#allocation2] sm:$0xf]
    %v38 = vld [vmem:[#allocation2 + $0x4] sm:$0xf]
    %v39 = vld [vmem:[#allocation2 + $0x8] sm:$0xf]
    %v40 = vld [vmem:[#allocation2 + $0xc] sm:$0xf]
    %v41 = vld [vmem:[%s0] sm:$0xff]
    %v42 = vld [vmem:[%s0 + $0x8] sm:$0xff]
    %v43 = vld [vmem:[%s0 + $0x10] sm:$0xff]
    %v44 = vld [vmem:[%s0 + $0x18] sm:$0xff]
    %v45 = vld [vmem:[%s0 + $0x20] sm:$0x33]
    %v46 = vld [vmem:[%s2] sm:$0xff]
    %v47 = vld [vmem:[%s2 + $0x8] sm:$0xff]
    %v48 = vld [vmem:[%s2 + $0x10] sm:$0xff]
    %v49 = vld [vmem:[%s2 + $0x18] sm:$0xff]
    %51 = vset.pattern.permute.xlu0 0
    %52 = vperm.xlu0 %51, %v46
    %v53 = vpop.permute.xlu0 %52
    %56 = vset.pattern.permute.xlu0 0
    %57 = vperm.xlu0 %56, %v47
    %v58 = vpop.permute.xlu0 %57
    %61 = vset.pattern.permute.xlu0 0
    %62 = vperm.xlu0 %61, %v48
    %v63 = vpop.permute.xlu0 %62
    %66 = vset.pattern.permute.xlu0 0
    %67 = vperm.xlu0 %66, %v49
    %v68 = vpop.permute.xlu0 %67
    %v74 = vunpack.c.l.b16 %v37
    %v75 = vunpack.c.l.b16 %v38
    %v76 = vunpack.c.l.b16 %v39
    %v77 = vunpack.c.l.b16 %v40
    %v78 = vpack.c.b16 %v75, %v74
    %v79 = vpack.c.b16 %v77, %v76
    %v85 = vunpack.c.l.b16 %v41
    %v86 = vunpack.c.h.b16 %v41
    %v87 = vunpack.c.l.b16 %v42
    %v88 = vunpack.c.h.b16 %v42
    %v89 = vunpack.c.l.b16 %v43
    %v90 = vunpack.c.h.b16 %v43
    %v91 = vunpack.c.l.b16 %v44
    %v92 = vunpack.c.h.b16 %v44
    %v93 = vunpack.c.l.b16 %v45
    %v94 = vunpack.c.h.b16 %v45
    %v95 = vpack.c.b16 %v87, %v85
    %v96 = vpack.c.b16 %v88, %v86
    %v97 = vpack.c.b16 %v91, %v89
    %v98 = vpack.c.b16 %v92, %v90
    %v99 = vpack.c.b16 %v93, %v93
    %v100 = vpack.c.b16 %v94, %v94
    %vm105 = vcmask 293888
    %v107 = vsel %vm105, %v78, 0
    %v110 = vsel %vm105, %v79, 0
    %vm112 = vcmask 1041408
    %v114 = vsel %vm112, %v99, 0
    %v117 = vsel %vm112, %v100, 0
    %119 = vmatprep.subr.bf16.mxu0 %v96
    %120 = vmatpush1.bf16.msra.mxu0 %v95
    %121 = vmatprep.subr.bf16.mxu0 %v98
    %122 = vmatpush1.bf16.msra.mxu0 %v97
    %123 = vmatprep.subr.bf16.mxu0 %v117
    %124 = vmatpush1.bf16.msra.mxu0 %v114
    %125 = vmatprep.subr.bf16.mxu0 0
    %126 = vmatpush1.bf16.msra.mxu0 0
    %127 = vmatprep.subr.bf16.mxu0 0
    %128 = vmatpush1.bf16.msra.mxu0 0
    %129 = vmatprep.subr.bf16.mxu0 0
    %130 = vmatpush1.bf16.msra.mxu0 0
    %131 = vmatprep.subr.bf16.mxu0 0
    %132 = vmatpush1.bf16.msra.mxu0 0
    %133 = vmatprep.subr.bf16.mxu0 0
    %134 = vmatpush1.bf16.msra.mxu0 0
    %135 = vmatprep.subr.bf16.mxu0 0
    %136 = vmatpush1.bf16.msra.mxu0 0
    %137 = vmatprep.subr.bf16.mxu0 0
    %138 = vmatpush1.bf16.msra.mxu0 0
    %139 = vmatprep.subr.bf16.mxu0 0
    %140 = vmatpush1.bf16.msra.mxu0 0
    %141 = vmatprep.subr.bf16.mxu0 0
    %142 = vmatpush1.bf16.msra.mxu0 0
    %143 = vmatprep.subr.bf16.mxu0 0
    %144 = vmatpush1.bf16.msra.mxu0 0
    %145 = vmatprep.subr.bf16.mxu0 0
    %146 = vmatpush1.bf16.msra.mxu0 0
    %147 = vmatprep.subr.bf16.mxu0 0
    %148 = vmatpush1.bf16.msra.mxu0 0
    %149 = vmatprep.subr.bf16.mxu0 0
    %150 = vmatpush1.bf16.msra.mxu0 0
    %151 = vmatprep.mubr.bf16.mxu0 0
    %152 = vmatmul.mubr.bf16.gmra.mrb[0].mxu0 %v107
    %v153 = vpop.f32.mrb[0].mxu0
    %v154 = vadd.f32 %v53, %v153
    %v155 = vpop.f32.mrb[0].mxu0
    %v156 = vadd.f32 %v53, %v155
    %v157 = vpop.f32.mrb[0].mxu0
    %v158 = vadd.f32 %v58, %v157
    %v159 = vpop.f32.mrb[0].mxu0
    %v160 = vadd.f32 %v58, %v159
    %161 = vmatprep.mubr.bf16.mxu0 0
    %162 = vmatmul.mubr.bf16.gmra.mrb[0].mxu0 %v110
    %v163 = vpop.f32.mrb[0].mxu0
    %v164 = vadd.f32 %v63, %v163
    %v165 = vpop.f32.mrb[0].mxu0
    %v166 = vadd.f32 %v63, %v165
    %v167 = vpop.f32.mrb[0].mxu0
    %v168 = vadd.f32 %v68, %v167
    %v169 = vpop.f32.mrb[0].mxu0
    %v170 = vadd.f32 %v68, %v169
    %171 = vdwg.mxu0
    %v172 = vmax.f32 %v154, 0.0
    %v173 = vmax.f32 %v156, 0.0
    %v174 = vmax.f32 %v158, 0.0
    %v175 = vmax.f32 %v160, 0.0
    %v176 = vmax.f32 %v164, 0.0
    %v177 = vmax.f32 %v166, 0.0
    %v178 = vmax.f32 %v168, 0.0
    %v179 = vmax.f32 %v170, 0.0
    %v180 = vcombine.high %v172, 0.0
    %v182 = vunpack.c.l.s4 1983009808
    %v183 = vunpack.c.0.s8 %v182
    %v184 = vlaneseq
    %v185 = vshrl.u32 %v184, 7
    %v186 = vsub.s32 %v183, %v185
    %v187 = vrot.slane %v172, %v186
    %v189 = vunpack.c.l.s4 1983009808
    %v190 = vunpack.c.0.s8 %v189
    %v191 = vlaneseq
    %v192 = vshrl.u32 %v191, 7
    %v193 = vsub.s32 %v190, %v192
    %v194 = vrot.slane %v180, %v193
    %v195 = vcombine.high %v173, 0.0
    %v197 = vunpack.c.l.s4 1983009808
    %v198 = vunpack.c.0.s8 %v197
    %v199 = vlaneseq
    %v200 = vshrl.u32 %v199, 7
    %v201 = vsub.s32 %v198, %v200
    %v202 = vrot.slane %v173, %v201
    %v204 = vunpack.c.l.s4 1983009808
    %v205 = vunpack.c.0.s8 %v204
    %v206 = vlaneseq
    %v207 = vshrl.u32 %v206, 7
    %v208 = vsub.s32 %v205, %v207
    %v209 = vrot.slane %v195, %v208
    %v210 = vcombine.low %v187, %v202
    %v211 = vcombine.high %v187, %v202
    %v213 = vunpack.c.l.s4 1934713408
    %v214 = vunpack.c.0.s8 %v213
    %v215 = vlaneseq
    %v216 = vshrl.u32 %v215, 7
    %v217 = vsub.s32 %v214, %v216
    %v218 = vrot.slane %v210, %v217
    %v220 = vunpack.c.l.s4 1934713408
    %v221 = vunpack.c.0.s8 %v220
    %v222 = vlaneseq
    %v223 = vshrl.u32 %v222, 7
    %v224 = vsub.s32 %v221, %v223
    %v225 = vrot.slane %v211, %v224
    %v226 = vcombine.low %v194, %v209
    %v227 = vcombine.high %v194, %v209
    %v229 = vunpack.c.l.s4 1934713408
    %v230 = vunpack.c.0.s8 %v229
    %v231 = vlaneseq
    %v232 = vshrl.u32 %v231, 7
    %v233 = vsub.s32 %v230, %v232
    %v234 = vrot.slane %v226, %v233
    %v236 = vunpack.c.l.s4 1934713408
    %v237 = vunpack.c.0.s8 %v236
    %v238 = vlaneseq
    %v239 = vshrl.u32 %v238, 7
    %v240 = vsub.s32 %v237, %v239
    %v241 = vrot.slane %v227, %v240
    %v242 = vcombine.high %v218, 0.0
    %v243 = vcombine.high %v225, 0.0
    %v244 = vcombine.high %v234, 0.0
    %v245 = vcombine.high %v241, 0.0
    %v246 = vcombine.high %v174, 0.0
    %v248 = vunpack.c.l.s4 1983009808
    %v249 = vunpack.c.0.s8 %v248
    %v250 = vlaneseq
    %v251 = vshrl.u32 %v250, 7
    %v252 = vsub.s32 %v249, %v251
    %v253 = vrot.slane %v174, %v252
    %v255 = vunpack.c.l.s4 1983009808
    %v256 = vunpack.c.0.s8 %v255
    %v257 = vlaneseq
    %v258 = vshrl.u32 %v257, 7
    %v259 = vsub.s32 %v256, %v258
    %v260 = vrot.slane %v246, %v259
    %v261 = vcombine.high %v175, 0.0
    %v263 = vunpack.c.l.s4 1983009808
    %v264 = vunpack.c.0.s8 %v263
    %v265 = vlaneseq
    %v266 = vshrl.u32 %v265, 7
    %v267 = vsub.s32 %v264, %v266
    %v268 = vrot.slane %v175, %v267
    %v270 = vunpack.c.l.s4 1983009808
    %v271 = vunpack.c.0.s8 %v270
    %v272 = vlaneseq
    %v273 = vshrl.u32 %v272, 7
    %v274 = vsub.s32 %v271, %v273
    %v275 = vrot.slane %v261, %v274
    %v276 = vcombine.low %v253, %v268
    %v277 = vcombine.high %v253, %v268
    %v279 = vunpack.c.l.s4 1934713408
    %v280 = vunpack.c.0.s8 %v279
    %v281 = vlaneseq
    %v282 = vshrl.u32 %v281, 7
    %v283 = vsub.s32 %v280, %v282
    %v284 = vrot.slane %v276, %v283
    %v286 = vunpack.c.l.s4 1934713408
    %v287 = vunpack.c.0.s8 %v286
    %v288 = vlaneseq
    %v289 = vshrl.u32 %v288, 7
    %v290 = vsub.s32 %v287, %v289
    %v291 = vrot.slane %v277, %v290
    %v292 = vcombine.low %v260, %v275
    %v293 = vcombine.high %v260, %v275
    %v295 = vunpack.c.l.s4 1934713408
    %v296 = vunpack.c.0.s8 %v295
    %v297 = vlaneseq
    %v298 = vshrl.u32 %v297, 7
    %v299 = vsub.s32 %v296, %v298
    %v300 = vrot.slane %v292, %v299
    %v302 = vunpack.c.l.s4 1934713408
    %v303 = vunpack.c.0.s8 %v302
    %v304 = vlaneseq
    %v305 = vshrl.u32 %v304, 7
    %v306 = vsub.s32 %v303, %v305
    %v307 = vrot.slane %v293, %v306
    %v308 = vcombine.high %v284, 0.0
    %v309 = vcombine.high %v291, 0.0
    %v310 = vcombine.high %v300, 0.0
    %v311 = vcombine.high %v307, 0.0
    %v312 = vcombine.high %v176, 0.0
    %v314 = vunpack.c.l.s4 1983009808
    %v315 = vunpack.c.0.s8 %v314
    %v316 = vlaneseq
    %v317 = vshrl.u32 %v316, 7
    %v318 = vsub.s32 %v315, %v317
    %v319 = vrot.slane %v176, %v318
    %v321 = vunpack.c.l.s4 1983009808
    %v322 = vunpack.c.0.s8 %v321
    %v323 = vlaneseq
    %v324 = vshrl.u32 %v323, 7
    %v325 = vsub.s32 %v322, %v324
    %v326 = vrot.slane %v312, %v325
    %v327 = vcombine.high %v177, 0.0
    %v329 = vunpack.c.l.s4 1983009808
    %v330 = vunpack.c.0.s8 %v329
    %v331 = vlaneseq
    %v332 = vshrl.u32 %v331, 7
    %v333 = vsub.s32 %v330, %v332
    %v334 = vrot.slane %v177, %v333
    %v336 = vunpack.c.l.s4 1983009808
    %v337 = vunpack.c.0.s8 %v336
    %v338 = vlaneseq
    %v339 = vshrl.u32 %v338, 7
    %v340 = vsub.s32 %v337, %v339
    %v341 = vrot.slane %v327, %v340
    %v342 = vcombine.low %v319, %v334
    %v343 = vcombine.high %v319, %v334
    %v345 = vunpack.c.l.s4 1934713408
    %v346 = vunpack.c.0.s8 %v345
    %v347 = vlaneseq
    %v348 = vshrl.u32 %v347, 7
    %v349 = vsub.s32 %v346, %v348
    %v350 = vrot.slane %v342, %v349
    %v352 = vunpack.c.l.s4 1934713408
    %v353 = vunpack.c.0.s8 %v352
    %v354 = vlaneseq
    %v355 = vshrl.u32 %v354, 7
    %v356 = vsub.s32 %v353, %v355
    %v357 = vrot.slane %v343, %v356
    %v358 = vcombine.low %v326, %v341
    %v359 = vcombine.high %v326, %v341
    %v361 = vunpack.c.l.s4 1934713408
    %v362 = vunpack.c.0.s8 %v361
    %v363 = vlaneseq
    %v364 = vshrl.u32 %v363, 7
    %v365 = vsub.s32 %v362, %v364
    %v366 = vrot.slane %v358, %v365
    %v368 = vunpack.c.l.s4 1934713408
    %v369 = vunpack.c.0.s8 %v368
    %v370 = vlaneseq
    %v371 = vshrl.u32 %v370, 7
    %v372 = vsub.s32 %v369, %v371
    %v373 = vrot.slane %v359, %v372
    %v374 = vcombine.high %v350, 0.0
    %v375 = vcombine.high %v357, 0.0
    %v376 = vcombine.high %v366, 0.0
    %v377 = vcombine.high %v373, 0.0
    %v378 = vcombine.high %v178, 0.0
    %v380 = vunpack.c.l.s4 1983009808
    %v381 = vunpack.c.0.s8 %v380
    %v382 = vlaneseq
    %v383 = vshrl.u32 %v382, 7
    %v384 = vsub.s32 %v381, %v383
    %v385 = vrot.slane %v178, %v384
    %v387 = vunpack.c.l.s4 1983009808
    %v388 = vunpack.c.0.s8 %v387
    %v389 = vlaneseq
    %v390 = vshrl.u32 %v389, 7
    %v391 = vsub.s32 %v388, %v390
    %v392 = vrot.slane %v378, %v391
    %v393 = vcombine.high %v179, 0.0
    %v395 = vunpack.c.l.s4 1983009808
    %v396 = vunpack.c.0.s8 %v395
    %v397 = vlaneseq
    %v398 = vshrl.u32 %v397, 7
    %v399 = vsub.s32 %v396, %v398
    %v400 = vrot.slane %v179, %v399
    %v402 = vunpack.c.l.s4 1983009808
    %v403 = vunpack.c.0.s8 %v402
    %v404 = vlaneseq
    %v405 = vshrl.u32 %v404, 7
    %v406 = vsub.s32 %v403, %v405
    %v407 = vrot.slane %v393, %v406
    %v408 = vcombine.low %v385, %v400
    %v409 = vcombine.high %v385, %v400
    %v411 = vunpack.c.l.s4 1934713408
    %v412 = vunpack.c.0.s8 %v411
    %v413 = vlaneseq
    %v414 = vshrl.u32 %v413, 7
    %v415 = vsub.s32 %v412, %v414
    %v416 = vrot.slane %v408, %v415
    %v418 = vunpack.c.l.s4 1934713408
    %v419 = vunpack.c.0.s8 %v418
    %v420 = vlaneseq
    %v421 = vshrl.u32 %v420, 7
    %v422 = vsub.s32 %v419, %v421
    %v423 = vrot.slane %v409, %v422
    %v424 = vcombine.low %v392, %v407
    %v425 = vcombine.high %v392, %v407
    %v427 = vunpack.c.l.s4 1934713408
    %v428 = vunpack.c.0.s8 %v427
    %v429 = vlaneseq
    %v430 = vshrl.u32 %v429, 7
    %v431 = vsub.s32 %v428, %v430
    %v432 = vrot.slane %v424, %v431
    %v434 = vunpack.c.l.s4 1934713408
    %v435 = vunpack.c.0.s8 %v434
    %v436 = vlaneseq
    %v437 = vshrl.u32 %v436, 7
    %v438 = vsub.s32 %v435, %v437
    %v439 = vrot.slane %v425, %v438
    %v440 = vcombine.high %v416, 0.0
    %v441 = vcombine.high %v423, 0.0
    %v442 = vcombine.high %v432, 0.0
    %v443 = vcombine.high %v439, 0.0
    %v444 = vsel %vm112, %v218, 0.0
    %445 = vadd.xlane.f32.xlu0 %v444
    %v446 = vpop.xlane.xlu0 %445
    %v447 = vsel %vm112, %v242, 0.0
    %448 = vadd.xlane.f32.xlu0 %v447
    %v449 = vpop.xlane.xlu0 %448
    %v450 = vsel %vm112, %v225, 0.0
    %451 = vadd.xlane.f32.xlu0 %v450
    %v452 = vpop.xlane.xlu0 %451
    %v453 = vsel %vm112, %v243, 0.0
    %454 = vadd.xlane.f32.xlu0 %v453
    %v455 = vpop.xlane.xlu0 %454
    %v456 = vsel %vm112, %v234, 0.0
    %457 = vadd.xlane.f32.xlu0 %v456
    %v458 = vpop.xlane.xlu0 %457
    %v459 = vsel %vm112, %v244, 0.0
    %460 = vadd.xlane.f32.xlu0 %v459
    %v461 = vpop.xlane.xlu0 %460
    %v462 = vsel %vm112, %v241, 0.0
    %463 = vadd.xlane.f32.xlu0 %v462
    %v464 = vpop.xlane.xlu0 %463
    %v465 = vsel %vm112, %v245, 0.0
    %466 = vadd.xlane.f32.xlu0 %v465
    %v467 = vpop.xlane.xlu0 %466
    %v468 = vsel %vm112, %v284, 0.0
    %469 = vadd.xlane.f32.xlu0 %v468
    %v470 = vpop.xlane.xlu0 %469
    %v471 = vsel %vm112, %v308, 0.0
    %472 = vadd.xlane.f32.xlu0 %v471
    %v473 = vpop.xlane.xlu0 %472
    %v474 = vsel %vm112, %v291, 0.0
    %475 = vadd.xlane.f32.xlu0 %v474
    %v476 = vpop.xlane.xlu0 %475
    %v477 = vsel %vm112, %v309, 0.0
    %478 = vadd.xlane.f32.xlu0 %v477
    %v479 = vpop.xlane.xlu0 %478
    %v480 = vsel %vm112, %v300, 0.0
    %481 = vadd.xlane.f32.xlu0 %v480
    %v482 = vpop.xlane.xlu0 %481
    %v483 = vsel %vm112, %v310, 0.0
    %484 = vadd.xlane.f32.xlu0 %v483
    %v485 = vpop.xlane.xlu0 %484
    %v486 = vsel %vm112, %v307, 0.0
    %487 = vadd.xlane.f32.xlu0 %v486
    %v488 = vpop.xlane.xlu0 %487
    %v489 = vsel %vm112, %v311, 0.0
    %490 = vadd.xlane.f32.xlu0 %v489
    %v491 = vpop.xlane.xlu0 %490
    %v492 = vsel %vm112, %v350, 0.0
    %493 = vadd.xlane.f32.xlu0 %v492
    %v494 = vpop.xlane.xlu0 %493
    %v495 = vsel %vm112, %v374, 0.0
    %496 = vadd.xlane.f32.xlu0 %v495
    %v497 = vpop.xlane.xlu0 %496
    %v498 = vsel %vm112, %v357, 0.0
    %499 = vadd.xlane.f32.xlu0 %v498
    %v500 = vpop.xlane.xlu0 %499
    %v501 = vsel %vm112, %v375, 0.0
    %502 = vadd.xlane.f32.xlu0 %v501
    %v503 = vpop.xlane.xlu0 %502
    %v504 = vsel %vm112, %v366, 0.0
    %505 = vadd.xlane.f32.xlu0 %v504
    %v506 = vpop.xlane.xlu0 %505
    %v507 = vsel %vm112, %v376, 0.0
    %508 = vadd.xlane.f32.xlu0 %v507
    %v509 = vpop.xlane.xlu0 %508
    %v510 = vsel %vm112, %v373, 0.0
    %511 = vadd.xlane.f32.xlu0 %v510
    %v512 = vpop.xlane.xlu0 %511
    %v513 = vsel %vm112, %v377, 0.0
    %514 = vadd.xlane.f32.xlu0 %v513
    %v515 = vpop.xlane.xlu0 %514
    %v516 = vsel %vm112, %v416, 0.0
    %517 = vadd.xlane.f32.xlu0 %v516
    %v518 = vpop.xlane.xlu0 %517
    %v519 = vsel %vm112, %v440, 0.0
    %520 = vadd.xlane.f32.xlu0 %v519
    %v521 = vpop.xlane.xlu0 %520
    %v522 = vsel %vm112, %v423, 0.0
    %523 = vadd.xlane.f32.xlu0 %v522
    %v524 = vpop.xlane.xlu0 %523
    %v525 = vsel %vm112, %v441, 0.0
    %526 = vadd.xlane.f32.xlu0 %v525
    %v527 = vpop.xlane.xlu0 %526
    %v528 = vsel %vm112, %v432, 0.0
    %529 = vadd.xlane.f32.xlu0 %v528
    %v530 = vpop.xlane.xlu0 %529
    %v531 = vsel %vm112, %v442, 0.0
    %532 = vadd.xlane.f32.xlu0 %v531
    %v533 = vpop.xlane.xlu0 %532
    %v534 = vsel %vm112, %v439, 0.0
    %535 = vadd.xlane.f32.xlu0 %v534
    %v536 = vpop.xlane.xlu0 %535
    %v537 = vsel %vm112, %v443, 0.0
    %538 = vadd.xlane.f32.xlu0 %v537
    %v539 = vpop.xlane.xlu0 %538
    %v540 = vmul.f32 %v446, 0.0078125
    %v541 = vmul.f32 %v449, 0.0078125
    %v542 = vmul.f32 %v452, 0.0078125
    %v543 = vmul.f32 %v455, 0.0078125
    %v544 = vmul.f32 %v458, 0.0078125
    %v545 = vmul.f32 %v461, 0.0078125
    %v546 = vmul.f32 %v464, 0.0078125
    %v547 = vmul.f32 %v467, 0.0078125
    %v548 = vmul.f32 %v470, 0.0078125
    %v549 = vmul.f32 %v473, 0.0078125
    %v550 = vmul.f32 %v476, 0.0078125
    %v551 = vmul.f32 %v479, 0.0078125
    %v552 = vmul.f32 %v482, 0.0078125
    %v553 = vmul.f32 %v485, 0.0078125
    %v554 = vmul.f32 %v488, 0.0078125
    %v555 = vmul.f32 %v491, 0.0078125
    %v556 = vmul.f32 %v494, 0.0078125
    %v557 = vmul.f32 %v497, 0.0078125
    %v558 = vmul.f32 %v500, 0.0078125
    %v559 = vmul.f32 %v503, 0.0078125
    %v560 = vmul.f32 %v506, 0.0078125
    %v561 = vmul.f32 %v509, 0.0078125
    %v562 = vmul.f32 %v512, 0.0078125
    %v563 = vmul.f32 %v515, 0.0078125
    %v564 = vmul.f32 %v518, 0.0078125
    %v565 = vmul.f32 %v521, 0.0078125
    %v566 = vmul.f32 %v524, 0.0078125
    %v567 = vmul.f32 %v527, 0.0078125
    %v568 = vmul.f32 %v530, 0.0078125
    %v569 = vmul.f32 %v533, 0.0078125
    %v570 = vmul.f32 %v536, 0.0078125
    %v571 = vmul.f32 %v539, 0.0078125
    %v604 = vlaneseq
    %v605 = vand.u32 %v604, 127
    %v606 = vlaneseq
    %v607 = vshrl.u32 %v606, 7
    %v608 = vsub.s32 %v605, %v607
    %v609 = vrot.slane %v540, %v608
    %v610 = vlaneseq
    %v611 = vshrl.u32 %v610, 7
    %v612 = vsub.s32 %v605, %v611
    %v613 = vrot.slane %v541, %v612
    %v614 = vlaneseq
    %v615 = vshrl.u32 %v614, 7
    %v616 = vsub.s32 %v605, %v615
    %v617 = vrot.slane %v542, %v616
    %v618 = vlaneseq
    %v619 = vshrl.u32 %v618, 7
    %v620 = vsub.s32 %v605, %v619
    %v621 = vrot.slane %v543, %v620
    %v622 = vlaneseq
    %v623 = vshrl.u32 %v622, 7
    %v624 = vsub.s32 %v605, %v623
    %v625 = vrot.slane %v544, %v624
    %v626 = vlaneseq
    %v627 = vshrl.u32 %v626, 7
    %v628 = vsub.s32 %v605, %v627
    %v629 = vrot.slane %v545, %v628
    %v630 = vlaneseq
    %v631 = vshrl.u32 %v630, 7
    %v632 = vsub.s32 %v605, %v631
    %v633 = vrot.slane %v546, %v632
    %v634 = vlaneseq
    %v635 = vshrl.u32 %v634, 7
    %v636 = vsub.s32 %v605, %v635
    %v637 = vrot.slane %v547, %v636
    %v638 = vlaneseq
    %v639 = vshrl.u32 %v638, 7
    %v640 = vsub.s32 %v605, %v639
    %v641 = vrot.slane %v548, %v640
    %v642 = vlaneseq
    %v643 = vshrl.u32 %v642, 7
    %v644 = vsub.s32 %v605, %v643
    %v645 = vrot.slane %v549, %v644
    %v646 = vlaneseq
    %v647 = vshrl.u32 %v646, 7
    %v648 = vsub.s32 %v605, %v647
    %v649 = vrot.slane %v550, %v648
    %v650 = vlaneseq
    %v651 = vshrl.u32 %v650, 7
    %v652 = vsub.s32 %v605, %v651
    %v653 = vrot.slane %v551, %v652
    %v654 = vlaneseq
    %v655 = vshrl.u32 %v654, 7
    %v656 = vsub.s32 %v605, %v655
    %v657 = vrot.slane %v552, %v656
    %v658 = vlaneseq
    %v659 = vshrl.u32 %v658, 7
    %v660 = vsub.s32 %v605, %v659
    %v661 = vrot.slane %v553, %v660
    %v662 = vlaneseq
    %v663 = vshrl.u32 %v662, 7
    %v664 = vsub.s32 %v605, %v663
    %v665 = vrot.slane %v554, %v664
    %v666 = vlaneseq
    %v667 = vshrl.u32 %v666, 7
    %v668 = vsub.s32 %v605, %v667
    %v669 = vrot.slane %v555, %v668
    %v670 = vlaneseq
    %v671 = vshrl.u32 %v670, 7
    %v672 = vsub.s32 %v605, %v671
    %v673 = vrot.slane %v556, %v672
    %v674 = vlaneseq
    %v675 = vshrl.u32 %v674, 7
    %v676 = vsub.s32 %v605, %v675
    %v677 = vrot.slane %v557, %v676
    %v678 = vlaneseq
    %v679 = vshrl.u32 %v678, 7
    %v680 = vsub.s32 %v605, %v679
    %v681 = vrot.slane %v558, %v680
    %v682 = vlaneseq
    %v683 = vshrl.u32 %v682, 7
    %v684 = vsub.s32 %v605, %v683
    %v685 = vrot.slane %v559, %v684
    %v686 = vlaneseq
    %v687 = vshrl.u32 %v686, 7
    %v688 = vsub.s32 %v605, %v687
    %v689 = vrot.slane %v560, %v688
    %v690 = vlaneseq
    %v691 = vshrl.u32 %v690, 7
    %v692 = vsub.s32 %v605, %v691
    %v693 = vrot.slane %v561, %v692
    %v694 = vlaneseq
    %v695 = vshrl.u32 %v694, 7
    %v696 = vsub.s32 %v605, %v695
    %v697 = vrot.slane %v562, %v696
    %v698 = vlaneseq
    %v699 = vshrl.u32 %v698, 7
    %v700 = vsub.s32 %v605, %v699
    %v701 = vrot.slane %v563, %v700
    %v702 = vlaneseq
    %v703 = vshrl.u32 %v702, 7
    %v704 = vsub.s32 %v605, %v703
    %v705 = vrot.slane %v564, %v704
    %v706 = vlaneseq
    %v707 = vshrl.u32 %v706, 7
    %v708 = vsub.s32 %v605, %v707
    %v709 = vrot.slane %v565, %v708
    %v710 = vlaneseq
    %v711 = vshrl.u32 %v710, 7
    %v712 = vsub.s32 %v605, %v711
    %v713 = vrot.slane %v566, %v712
    %v714 = vlaneseq
    %v715 = vshrl.u32 %v714, 7
    %v716 = vsub.s32 %v605, %v715
    %v717 = vrot.slane %v567, %v716
    %v718 = vlaneseq
    %v719 = vshrl.u32 %v718, 7
    %v720 = vsub.s32 %v605, %v719
    %v721 = vrot.slane %v568, %v720
    %v722 = vlaneseq
    %v723 = vshrl.u32 %v722, 7
    %v724 = vsub.s32 %v605, %v723
    %v725 = vrot.slane %v569, %v724
    %v726 = vlaneseq
    %v727 = vshrl.u32 %v726, 7
    %v728 = vsub.s32 %v605, %v727
    %v729 = vrot.slane %v570, %v728
    %v730 = vlaneseq
    %v731 = vshrl.u32 %v730, 7
    %v732 = vsub.s32 %v605, %v731
    %v733 = vrot.slane %v571, %v732
    %vm734 = vcmask 1041409
    %v735 = vsel %vm734, %v613, %v609
    %vm736 = vcmask 1042434
    %v737 = vsel %vm736, %v617, %v735
    %vm738 = vcmask 1043459
    %v739 = vsel %vm738, %v621, %v737
    %vm740 = vcmask 1044484
    %v741 = vsel %vm740, %v625, %v739
    %vm742 = vcmask 1045509
    %v743 = vsel %vm742, %v629, %v741
    %vm744 = vcmask 1046534
    %v745 = vsel %vm744, %v633, %v743
    %vm746 = vcmask 1047559
    %v747 = vsel %vm746, %v637, %v745
    %v748 = vsel %vm734, %v645, %v641
    %v749 = vsel %vm736, %v649, %v748
    %v750 = vsel %vm738, %v653, %v749
    %v751 = vsel %vm740, %v657, %v750
    %v752 = vsel %vm742, %v661, %v751
    %v753 = vsel %vm744, %v665, %v752
    %v754 = vsel %vm746, %v669, %v753
    %v755 = vsel %vm734, %v677, %v673
    %v756 = vsel %vm736, %v681, %v755
    %v757 = vsel %vm738, %v685, %v756
    %v758 = vsel %vm740, %v689, %v757
    %v759 = vsel %vm742, %v693, %v758
    %v760 = vsel %vm744, %v697, %v759
    %v761 = vsel %vm746, %v701, %v760
    %v762 = vsel %vm734, %v709, %v705
    %v763 = vsel %vm736, %v713, %v762
    %v764 = vsel %vm738, %v717, %v763
    %v765 = vsel %vm740, %v721, %v764
    %v766 = vsel %vm742, %v725, %v765
    %v767 = vsel %vm744, %v729, %v766
    %v768 = vsel %vm746, %v733, %v767
    %vm773 = vcmask 15360
    %774 = vst.msk [vmem:[%s6] sm:$0xff] %vm773, %v747
    %775 = vst.msk [vmem:[%s6 + $0x8] sm:$0xff] %vm773, %v754
    %776 = vst.msk [vmem:[%s6 + $0x10] sm:$0xff] %vm773, %v761
    %777 = vst.msk [vmem:[%s6 + $0x18] sm:$0xff] %vm773, %v768
    %v778 = vld [vmem:[%s3] sm:$0xf]
    %v779 = vld [vmem:[%s3 + $0x4] sm:$0xf]
    %v780 = vpack.c.bf16 %v540, %v540
    %v781 = vpack.c.bf16 %v541, %v541
    %v782 = vpack.c.bf16 %v542, %v542
    %v783 = vpack.c.bf16 %v543, %v543
    %v784 = vpack.c.bf16 %v544, %v544
    %v785 = vpack.c.bf16 %v545, %v545
    %v786 = vpack.c.bf16 %v546, %v546
    %v787 = vpack.c.bf16 %v547, %v547
    %v788 = vpack.c.bf16 %v548, %v548
    %v789 = vpack.c.bf16 %v549, %v549
    %v790 = vpack.c.bf16 %v550, %v550
    %v791 = vpack.c.bf16 %v551, %v551
    %v792 = vpack.c.bf16 %v552, %v552
    %v793 = vpack.c.bf16 %v553, %v553
    %v794 = vpack.c.bf16 %v554, %v554
    %v795 = vpack.c.bf16 %v555, %v555
    %v796 = vpack.c.bf16 %v556, %v556
    %v797 = vpack.c.bf16 %v557, %v557
    %v798 = vpack.c.bf16 %v558, %v558
    %v799 = vpack.c.bf16 %v559, %v559
    %v800 = vpack.c.bf16 %v560, %v560
    %v801 = vpack.c.bf16 %v561, %v561
    %v802 = vpack.c.bf16 %v562, %v562
    %v803 = vpack.c.bf16 %v563, %v563
    %v804 = vpack.c.bf16 %v564, %v564
    %v805 = vpack.c.bf16 %v565, %v565
    %v806 = vpack.c.bf16 %v566, %v566
    %v807 = vpack.c.bf16 %v567, %v567
    %v808 = vpack.c.bf16 %v568, %v568
    %v809 = vpack.c.bf16 %v569, %v569
    %v810 = vpack.c.bf16 %v570, %v570
    %v811 = vpack.c.bf16 %v571, %v571
    %v812 = vld [vmem:[%s4] sm:$0xff]
    %v813 = vld [vmem:[%s4 + $0x8] sm:$0xff]
    %815 = vset.pattern.permute.xlu0 0
    %816 = vperm.xlu0 %815, %v812
    %v817 = vpop.permute.xlu0 %816
    %820 = vset.pattern.permute.xlu0 0
    %821 = vperm.xlu0 %820, %v813
    %v822 = vpop.permute.xlu0 %821
    %v826 = vunpack.c.l.b16 %v778
    %v827 = vunpack.c.l.b16 %v779
    %v828 = vpack.c.b16 %v827, %v826
    %v861 = vunpack.c.l.b16 %v780
    %v862 = vunpack.c.l.b16 %v781
    %v863 = vunpack.c.l.b16 %v782
    %v864 = vunpack.c.l.b16 %v783
    %v865 = vunpack.c.l.b16 %v784
    %v866 = vunpack.c.l.b16 %v785
    %v867 = vunpack.c.l.b16 %v786
    %v868 = vunpack.c.l.b16 %v787
    %v869 = vunpack.c.l.b16 %v788
    %v870 = vunpack.c.l.b16 %v789
    %v871 = vunpack.c.l.b16 %v790
    %v872 = vunpack.c.l.b16 %v791
    %v873 = vunpack.c.l.b16 %v792
    %v874 = vunpack.c.l.b16 %v793
    %v875 = vunpack.c.l.b16 %v794
    %v876 = vunpack.c.l.b16 %v795
    %v877 = vunpack.c.l.b16 %v796
    %v878 = vunpack.c.l.b16 %v797
    %v879 = vunpack.c.l.b16 %v798
    %v880 = vunpack.c.l.b16 %v799
    %v881 = vunpack.c.l.b16 %v800
    %v882 = vunpack.c.l.b16 %v801
    %v883 = vunpack.c.l.b16 %v802
    %v884 = vunpack.c.l.b16 %v803
    %v885 = vunpack.c.l.b16 %v804
    %v886 = vunpack.c.l.b16 %v805
    %v887 = vunpack.c.l.b16 %v806
    %v888 = vunpack.c.l.b16 %v807
    %v889 = vunpack.c.l.b16 %v808
    %v890 = vunpack.c.l.b16 %v809
    %v891 = vunpack.c.l.b16 %v810
    %v892 = vunpack.c.l.b16 %v811
    %v893 = vlaneseq
    %v894 = vshrl.u32 %v893, 7
    %v895 = vsub.s32 %v605, %v894
    %v896 = vrot.slane %v861, %v895
    %v897 = vlaneseq
    %v898 = vshrl.u32 %v897, 7
    %v899 = vsub.s32 %v605, %v898
    %v900 = vrot.slane %v862, %v899
    %v901 = vlaneseq
    %v902 = vshrl.u32 %v901, 7
    %v903 = vsub.s32 %v605, %v902
    %v904 = vrot.slane %v863, %v903
    %v905 = vlaneseq
    %v906 = vshrl.u32 %v905, 7
    %v907 = vsub.s32 %v605, %v906
    %v908 = vrot.slane %v864, %v907
    %v909 = vlaneseq
    %v910 = vshrl.u32 %v909, 7
    %v911 = vsub.s32 %v605, %v910
    %v912 = vrot.slane %v865, %v911
    %v913 = vlaneseq
    %v914 = vshrl.u32 %v913, 7
    %v915 = vsub.s32 %v605, %v914
    %v916 = vrot.slane %v866, %v915
    %v917 = vlaneseq
    %v918 = vshrl.u32 %v917, 7
    %v919 = vsub.s32 %v605, %v918
    %v920 = vrot.slane %v867, %v919
    %v921 = vlaneseq
    %v922 = vshrl.u32 %v921, 7
    %v923 = vsub.s32 %v605, %v922
    %v924 = vrot.slane %v868, %v923
    %v925 = vlaneseq
    %v926 = vshrl.u32 %v925, 7
    %v927 = vsub.s32 %v605, %v926
    %v928 = vrot.slane %v869, %v927
    %v929 = vlaneseq
    %v930 = vshrl.u32 %v929, 7
    %v931 = vsub.s32 %v605, %v930
    %v932 = vrot.slane %v870, %v931
    %v933 = vlaneseq
    %v934 = vshrl.u32 %v933, 7
    %v935 = vsub.s32 %v605, %v934
    %v936 = vrot.slane %v871, %v935
    %v937 = vlaneseq
    %v938 = vshrl.u32 %v937, 7
    %v939 = vsub.s32 %v605, %v938
    %v940 = vrot.slane %v872, %v939
    %v941 = vlaneseq
    %v942 = vshrl.u32 %v941, 7
    %v943 = vsub.s32 %v605, %v942
    %v944 = vrot.slane %v873, %v943
    %v945 = vlaneseq
    %v946 = vshrl.u32 %v945, 7
    %v947 = vsub.s32 %v605, %v946
    %v948 = vrot.slane %v874, %v947
    %v949 = vlaneseq
    %v950 = vshrl.u32 %v949, 7
    %v951 = vsub.s32 %v605, %v950
    %v952 = vrot.slane %v875, %v951
    %v953 = vlaneseq
    %v954 = vshrl.u32 %v953, 7
    %v955 = vsub.s32 %v605, %v954
    %v956 = vrot.slane %v876, %v955
    %v957 = vlaneseq
    %v958 = vshrl.u32 %v957, 7
    %v959 = vsub.s32 %v605, %v958
    %v960 = vrot.slane %v877, %v959
    %v961 = vlaneseq
    %v962 = vshrl.u32 %v961, 7
    %v963 = vsub.s32 %v605, %v962
    %v964 = vrot.slane %v878, %v963
    %v965 = vlaneseq
    %v966 = vshrl.u32 %v965, 7
    %v967 = vsub.s32 %v605, %v966
    %v968 = vrot.slane %v879, %v967
    %v969 = vlaneseq
    %v970 = vshrl.u32 %v969, 7
    %v971 = vsub.s32 %v605, %v970
    %v972 = vrot.slane %v880, %v971
    %v973 = vlaneseq
    %v974 = vshrl.u32 %v973, 7
    %v975 = vsub.s32 %v605, %v974
    %v976 = vrot.slane %v881, %v975
    %v977 = vlaneseq
    %v978 = vshrl.u32 %v977, 7
    %v979 = vsub.s32 %v605, %v978
    %v980 = vrot.slane %v882, %v979
    %v981 = vlaneseq
    %v982 = vshrl.u32 %v981, 7
    %v983 = vsub.s32 %v605, %v982
    %v984 = vrot.slane %v883, %v983
    %v985 = vlaneseq
    %v986 = vshrl.u32 %v985, 7
    %v987 = vsub.s32 %v605, %v986
    %v988 = vrot.slane %v884, %v987
    %v989 = vlaneseq
    %v990 = vshrl.u32 %v989, 7
    %v991 = vsub.s32 %v605, %v990
    %v992 = vrot.slane %v885, %v991
    %v993 = vlaneseq
    %v994 = vshrl.u32 %v993, 7
    %v995 = vsub.s32 %v605, %v994
    %v996 = vrot.slane %v886, %v995
    %v997 = vlaneseq
    %v998 = vshrl.u32 %v997, 7
    %v999 = vsub.s32 %v605, %v998
    %v1000 = vrot.slane %v887, %v999
    %v1001 = vlaneseq
    %v1002 = vshrl.u32 %v1001, 7
    %v1003 = vsub.s32 %v605, %v1002
    %v1004 = vrot.slane %v888, %v1003
    %v1005 = vlaneseq
    %v1006 = vshrl.u32 %v1005, 7
    %v1007 = vsub.s32 %v605, %v1006
    %v1008 = vrot.slane %v889, %v1007
    %v1009 = vlaneseq
    %v1010 = vshrl.u32 %v1009, 7
    %v1011 = vsub.s32 %v605, %v1010
    %v1012 = vrot.slane %v890, %v1011
    %v1013 = vlaneseq
    %v1014 = vshrl.u32 %v1013, 7
    %v1015 = vsub.s32 %v605, %v1014
    %v1016 = vrot.slane %v891, %v1015
    %v1017 = vlaneseq
    %v1018 = vshrl.u32 %v1017, 7
    %v1019 = vsub.s32 %v605, %v1018
    %v1020 = vrot.slane %v892, %v1019
    %v1021 = vsel %vm734, %v900, %v896
    %v1022 = vsel %vm736, %v904, %v1021
    %v1023 = vsel %vm738, %v908, %v1022
    %v1024 = vsel %vm740, %v912, %v1023
    %v1025 = vsel %vm742, %v916, %v1024
    %v1026 = vsel %vm744, %v920, %v1025
    %v1027 = vsel %vm746, %v924, %v1026
    %v1028 = vsel %vm734, %v932, %v928
    %v1029 = vsel %vm736, %v936, %v1028
    %v1030 = vsel %vm738, %v940, %v1029
    %v1031 = vsel %vm740, %v944, %v1030
    %v1032 = vsel %vm742, %v948, %v1031
    %v1033 = vsel %vm744, %v952, %v1032
    %v1034 = vsel %vm746, %v956, %v1033
    %v1035 = vsel %vm734, %v964, %v960
    %v1036 = vsel %vm736, %v968, %v1035
    %v1037 = vsel %vm738, %v972, %v1036
    %v1038 = vsel %vm740, %v976, %v1037
    %v1039 = vsel %vm742, %v980, %v1038
    %v1040 = vsel %vm744, %v984, %v1039
    %v1041 = vsel %vm746, %v988, %v1040
    %v1042 = vsel %vm734, %v996, %v992
    %v1043 = vsel %vm736, %v1000, %v1042
    %v1044 = vsel %vm738, %v1004, %v1043
    %v1045 = vsel %vm740, %v1008, %v1044
    %v1046 = vsel %vm742, %v1012, %v1045
    %v1047 = vsel %vm744, %v1016, %v1046
    %v1048 = vsel %vm746, %v1020, %v1047
    %v1049 = vpack.c.b16 %v1034, %v1027
    %v1050 = vpack.c.b16 %v1048, %v1041
    %vm1053 = vcmask 261120
    %v1055 = vsel %vm1053, %v828, 0
    %1057 = vmatprep.subr.bf16.mxu0 0
    %1058 = vmatpush1.bf16.msra.mxu0 %v1049
    %1059 = vmatprep.subr.bf16.mxu0 0
    %1060 = vmatpush1.bf16.msra.mxu0 %v1050
    %1061 = vmatprep.subr.bf16.mxu0 0
    %1062 = vmatpush1.bf16.msra.mxu0 0
    %1063 = vmatprep.subr.bf16.mxu0 0
    %1064 = vmatpush1.bf16.msra.mxu0 0
    %1065 = vmatprep.subr.bf16.mxu0 0
    %1066 = vmatpush1.bf16.msra.mxu0 0
    %1067 = vmatprep.subr.bf16.mxu0 0
    %1068 = vmatpush1.bf16.msra.mxu0 0
    %1069 = vmatprep.subr.bf16.mxu0 0
    %1070 = vmatpush1.bf16.msra.mxu0 0
    %1071 = vmatprep.subr.bf16.mxu0 0
    %1072 = vmatpush1.bf16.msra.mxu0 0
    %1073 = vmatprep.subr.bf16.mxu0 0
    %1074 = vmatpush1.bf16.msra.mxu0 0
    %1075 = vmatprep.subr.bf16.mxu0 0
    %1076 = vmatpush1.bf16.msra.mxu0 0
    %1077 = vmatprep.subr.bf16.mxu0 0
    %1078 = vmatpush1.bf16.msra.mxu0 0
    %1079 = vmatprep.subr.bf16.mxu0 0
    %1080 = vmatpush1.bf16.msra.mxu0 0
    %1081 = vmatprep.subr.bf16.mxu0 0
    %1082 = vmatpush1.bf16.msra.mxu0 0
    %1083 = vmatprep.subr.bf16.mxu0 0
    %1084 = vmatpush1.bf16.msra.mxu0 0
    %1085 = vmatprep.subr.bf16.mxu0 0
    %1086 = vmatpush1.bf16.msra.mxu0 0
    %1087 = vmatprep.subr.bf16.mxu0 0
    %1088 = vmatpush1.bf16.msra.mxu0 0
    %1089 = vmatprep.mubr.bf16.mxu0 0
    %1090 = vmatmul.mubr.bf16.gmra.mrb[0].mxu0 %v1055
    %v1091 = vpop.f32.mrb[0].mxu0
    %v1092 = vadd.f32 %v817, %v1091
    %v1093 = vpop.f32.mrb[0].mxu0
    %v1094 = vpop.f32.mrb[0].mxu0
    %v1095 = vadd.f32 %v822, %v1094
    %v1096 = vpop.f32.mrb[0].mxu0
    %1097 = vdwg.mxu0
    %1098 = vst.msk [vmem:[%s5] sm:$0xff] %vm773, %v1092
    %1099 = vst.msk [vmem:[%s5 + $0x8] sm:$0xff] %vm773, %v1095
    // Predicated region
    $region26: #{tpu_custom_call.1} parent=1 // pred_check
      _
    $region27: #{tpu_custom_call.1} parent=1 // pred_check_branch
      %1101 = sbr.rel (0) target = $region29
    $region28: #{tpu_custom_call.1} parent=1 // pred_region
      _
    $region29: #{tpu_custom_call.1} parent=1 // pred_fallthru
      _
    // Predicated region
    $region30: #{tpu_custom_call.1} parent=1 // pred_check
      _
    $region31: #{tpu_custom_call.1} parent=1 // pred_check_branch
      %1103 = sbr.rel (0) target = $region33
    $region32: #{tpu_custom_call.1} parent=1 // pred_region
      _
    $region33: #{tpu_custom_call.1} parent=1 // pred_fallthru
      _
    // Predicated region
    $region34: #{tpu_custom_call.1} parent=1 // pred_check
      _
    $region35: #{tpu_custom_call.1} parent=1 // pred_check_branch
      %1105 = sbr.rel (0) target = $region37
    $region36: #{tpu_custom_call.1} parent=1 // pred_region
      _
    $region37: #{tpu_custom_call.1} parent=1 // pred_fallthru
      _
    // Predicated region
    $region38: #{tpu_custom_call.1} parent=1 // pred_check
      _
    $region39: #{tpu_custom_call.1} parent=1 // pred_check_branch
      %1107 = sbr.rel (0) target = $region41
    $region40: #{tpu_custom_call.1} parent=1 // pred_region
      _
    $region41: #{tpu_custom_call.1} parent=1 // pred_fallthru
      _
    %1108 = vsyncpa [#allocation3], 1

</llo_original>
